<compile_context>
chip_gen: v5e
topology: v5e:2x2
jax: 0.10.0
libtpu: 0.0.40
codegen_flags: <defaults>
</compile_context>

<pallas_src>
import functools

import jax
import jax.numpy as jnp
from jax import lax
from jax.experimental import pallas as pl
from jax.experimental.pallas import tpu as pltpu

_LANES = 128


def _abce_kernel(x_ref, t_ref, o_ref, *, gamma, rows, block_rows,
                 steps_per_split, full_steps, needs_mask):
    c = pl.program_id(0)   # split axis ("parallel", shards rows across TCs)
    i = pl.program_id(1)   # reduction axis within this split ("arbitrary")

    @pl.when(i == 0)
    def _():
        o_ref[...] = jnp.zeros_like(o_ref)

    x = x_ref[...].astype(jnp.float32)
    t = t_ref[...].astype(jnp.float32)

    # One log + two selects per element (gamma folded into the algebra;
    # targets assumed binary {0,1}, same as torch.where(targets == 1, ...)):
    #   contrib = w * log(p),  p = x if t else (1 - x),  w = gamma if t else 1
    # log clamped at -100 to match PyTorch F.binary_cross_entropy.
    # Final negation + 1/N are applied once in the wrapper epilogue.
    is_pos = t != 0.0
    p = jnp.where(is_pos, x, 1.0 - x)
    logp = jnp.maximum(jnp.log(p), -100.0)
    contrib = jnp.where(is_pos, jnp.float32(gamma), jnp.float32(1.0)) * logp

    def accumulate(vals):
        # (block_rows,128) -> (block_rows//8, 8, 128) is (8,128)-tile aligned
        # (free); pure VPU adds into the resident (8,128) accumulator slab.
        o_ref[...] += vals.reshape(-1, 8, _LANES).sum(axis=0)

    if not needs_mask:
        accumulate(contrib)
    else:
        global_step = c * steps_per_split + i
        is_full_block = global_step < full_steps

        @pl.when(is_full_block)
        def _():
            accumulate(contrib)

        @pl.when(jnp.logical_not(is_full_block))
        def _():
            # Partial (or fully empty) tail block: zero rows beyond the data.
            # jnp.where selects, so any garbage/NaN in padding is discarded.
            row = global_step * block_rows + lax.broadcasted_iota(
                jnp.int32, (block_rows, _LANES), 0)
            accumulate(jnp.where(row < rows, contrib, 0.0))


def asymmetric_bce_loss(inputs, targets, gamma=2.0, block_rows=4096,
                        num_splits=1):
    """Mean of BCE(inputs, targets) weighted by `gamma` where targets == 1.

    Targets are assumed binary {0,1} (same assumption as the reference
    torch.where(targets == 1, gamma, 1.0)); soft targets are not supported.
    Set num_splits=2 on 2-TensorCore chips (v7x) to shard the row range.
    """
    n = int(inputs.size)
    x = inputs.reshape(-1)
    t = targets.reshape(-1)

    # Sublane multiple for the narrowest participating dtype
    # (8 for 4-byte, 16 for 2-byte, 32 for 1-byte dtypes).
    min_itemsize = min(jnp.dtype(x.dtype).itemsize, jnp.dtype(t.dtype).itemsize)
    sub = max(8, 32 // max(int(min_itemsize), 1))

    # At least one (sub, 128) tile of rows.
    rows = max(pl.cdiv(n, _LANES), sub)
    padded_n = rows * _LANES
    if padded_n != n:
        # Only the <128-element lane remainder (or a degenerate <1-tile input)
        # is ever padded. Zero padding contributes exactly 0 to the weighted
        # log sum: t=0 -> p = 1 - 0 = 1 -> log(1) = 0.
        x = jnp.pad(x, (0, padded_n - n))
        t = jnp.pad(t, (0, padded_n - n))
    # Lane-aligned sizes: pure layout-preserving reshape, no HBM copy.
    x = x.reshape(rows, _LANES)
    t = t.reshape(rows, _LANES)

    # Large blocks amortize the ~0.35 us per-step overhead; never exceed the
    # (sub-aligned) row count so every block start stays in bounds.
    block_rows = max(sub, min((int(block_rows) // sub) * sub,
                              (rows // sub) * sub))

    total_steps = pl.cdiv(rows, block_rows)
    num_splits = max(1, min(int(num_splits), total_steps))
    steps_per_split = pl.cdiv(total_steps, num_splits)
    num_splits = pl.cdiv(total_steps, steps_per_split)  # no wholly-empty split
    padded_steps = num_splits * steps_per_split

    full_steps = rows // block_rows                  # fully-valid blocks
    needs_mask = padded_steps * block_rows > rows    # partial / empty tail

    if padded_steps > total_steps:
        # Keep tail-step DMAs in bounds; their contribution is masked to zero.
        def in_map(c, i):
            return (jnp.minimum(c * steps_per_split + i, total_steps - 1), 0)
    else:
        def in_map(c, i):
            return (c * steps_per_split + i, 0)

    kernel = functools.partial(
        _abce_kernel, gamma=float(gamma), rows=rows, block_rows=block_rows,
        steps_per_split=steps_per_split, full_steps=full_steps,
        needs_mask=needs_mask)

    partials = pl.pallas_call(
        kernel,
        out_shape=jax.ShapeDtypeStruct((num_splits * 8, _LANES), jnp.float32),
        grid_spec=pltpu.PrefetchScalarGridSpec(
            num_scalar_prefetch=0,
            grid=(num_splits, steps_per_split),
            in_specs=[
                pl.BlockSpec((block_rows, _LANES), in_map),
                pl.BlockSpec((block_rows, _LANES), in_map),
            ],
            out_specs=pl.BlockSpec((8, _LANES), lambda c, i: (c, 0)),
        ),
        compiler_params=pltpu.CompilerParams(
            # TODO(synk): on v7x verify the leading axis shards across the two
            # TensorCores; if not, switch it to pltpu.CORE_PARALLEL.
            dimension_semantics=("parallel", "arbitrary"),
        ),
        cost_estimate=pl.CostEstimate(
            flops=6 * n,
            transcendentals=n,
            bytes_accessed=n * (int(jnp.dtype(inputs.dtype).itemsize)
                                + int(jnp.dtype(targets.dtype).itemsize))
            + num_splits * 8 * _LANES * 4,
        ),
    )(x, t)

    # Single cross-lane reduce, deferred negation and the 1/N mean.
    return -jnp.sum(partials) / n


def _reference(inputs, targets, gamma=2.0):
    x = inputs.astype(jnp.float32)
    t = targets.astype(jnp.float32)
    bce = -(t * jnp.maximum(jnp.log(x), -100.0)
            + (1.0 - t) * jnp.maximum(jnp.log(1.0 - x), -100.0))
    w = jnp.where(t == 1.0, gamma, 1.0)
    return jnp.mean(bce * w)


def _make_inputs(key, shape):
    k1, k2 = jax.random.split(key)
    # probabilities in (0,1), as expected by F.binary_cross_entropy
    inputs = jax.nn.sigmoid(jax.random.normal(k1, shape, dtype=jnp.float32))
    targets = (jax.random.uniform(k2, shape) > 0.5).astype(jnp.float32)
    return inputs, targets


if __name__ == "__main__":
    key = jax.random.PRNGKey(0)

    # 1) Small NCHW shape (lane-aligned, zero-copy fast path).
    k0, k1, k2 = jax.random.split(key, 3)
    inputs, targets = _make_inputs(k0, (2, 4, 16, 16))
    loss = jax.block_until_ready(asymmetric_bce_loss(inputs, targets, gamma=2.0))
    ref = _reference(inputs, targets, gamma=2.0)
    assert jnp.allclose(loss, ref, rtol=1e-4, atol=1e-6), (loss, ref)

    # 2) Non-lane-aligned size: exercises the <128-element pad and the
    #    in-kernel partial-block row mask.
    inputs2, targets2 = _make_inputs(k1, (3, 5, 91))
    loss2 = jax.block_until_ready(asymmetric_bce_loss(inputs2, targets2, gamma=2.0))
    ref2 = _reference(inputs2, targets2, gamma=2.0)
    assert jnp.allclose(loss2, ref2, rtol=1e-4, atol=1e-6), (loss2, ref2)

    # 3) Multi-split grid with a non-dividing block size: exercises the
    #    clamped index_map, empty tail step and partial trailing block.
    inputs3, targets3 = _make_inputs(k2, (4, 4, 64, 64))
    loss3 = jax.block_until_ready(
        asymmetric_bce_loss(inputs3, targets3, gamma=2.0,
                            block_rows=192, num_splits=2))
    ref3 = _reference(inputs3, targets3, gamma=2.0)
    assert jnp.allclose(loss3, ref3, rtol=1e-4, atol=1e-6), (loss3, ref3)

    print("KERNEL_OK")
</pallas_src>

<mosaic_0001>
module attributes {stable_mosaic.version = 11 : i64} {
  func.func @_abce_kernel(%arg0: i32, %arg1: i32, %arg2: memref<16x128xf32, #tpu.memory_space<vmem>>, %arg3: memref<16x128xf32, #tpu.memory_space<vmem>>, %arg4: memref<8x128xf32, #tpu.memory_space<vmem>>) attributes {dimension_semantics = [#tpu.dimension_semantics<parallel>, #tpu.dimension_semantics<arbitrary>], iteration_bounds = array<i64: 1, 1>, scalar_prefetch = 0 : i64, scratch_operands = 0 : i64, tpu.core_type = #tpu.core_type<tc>, window_params = [{transform_indices = @transform_0, window_bounds = array<i64: 16, 128>}, {transform_indices = @transform_1, window_bounds = array<i64: 16, 128>}, {transform_indices = @transform_2, window_bounds = array<i64: 8, 128>}]} {
    %c0_i32 = arith.constant 0 : i32
    %0 = arith.cmpi eq, %arg1, %c0_i32 : i32
    %1 = arith.extui %0 : i1 to i32
    %c0_i32_0 = arith.constant 0 : i32
    %2 = arith.cmpi ne, %1, %c0_i32_0 : i32
    scf.if %2 {
      %cst_13 = arith.constant 0.000000e+00 : f32
      %22 = vector.broadcast %cst_13 : f32 to vector<8x128xf32>
      %c0_14 = arith.constant 0 : index
      %c0_15 = arith.constant 0 : index
      %23 = vector.load %arg4[%c0_14, %c0_15] : memref<8x128xf32, #tpu.memory_space<vmem>>, vector<8x128xf32>
      tpu.vector_store %arg4[%c0_14, %c0_15], %22 {strides = array<i32>} : memref<8x128xf32, #tpu.memory_space<vmem>>, vector<8x128xf32>,
    } else {
    }
    %c0 = arith.constant 0 : index
    %c0_1 = arith.constant 0 : index
    %3 = vector.load %arg2[%c0, %c0_1] : memref<16x128xf32, #tpu.memory_space<vmem>>, vector<16x128xf32>
    %c0_2 = arith.constant 0 : index
    %c0_3 = arith.constant 0 : index
    %4 = vector.load %arg3[%c0_2, %c0_3] : memref<16x128xf32, #tpu.memory_space<vmem>>, vector<16x128xf32>
    %cst = arith.constant 0.000000e+00 : f32
    %5 = vector.broadcast %cst : f32 to vector<16x128xf32>
    %6 = arith.cmpf one, %4, %5 : vector<16x128xf32>
    %cst_4 = arith.constant 1.000000e+00 : f32
    %7 = vector.broadcast %cst_4 : f32 to vector<16x128xf32>
    %8 = arith.subf %7, %3 : vector<16x128xf32>
    %9 = arith.select %6, %3, %8 : vector<16x128xi1>, vector<16x128xf32>
    %10 = math.log %9 : vector<16x128xf32>
    %cst_5 = arith.constant -1.000000e+02 : f32
    %11 = vector.broadcast %cst_5 : f32 to vector<16x128xf32>
    %12 = arith.maximumf %10, %11 : vector<16x128xf32>
    %cst_6 = arith.constant 2.000000e+00 : f32
    %cst_7 = arith.constant 1.000000e+00 : f32
    %13 = vector.broadcast %cst_6 : f32 to vector<16x128xf32>
    %14 = vector.broadcast %cst_7 : f32 to vector<16x128xf32>
    %15 = arith.select %6, %13, %14 : vector<16x128xi1>, vector<16x128xf32>
    %16 = arith.mulf %15, %12 : vector<16x128xf32>
    %c0_8 = arith.constant 0 : index
    %c0_9 = arith.constant 0 : index
    %17 = vector.load %arg4[%c0_8, %c0_9] : memref<8x128xf32, #tpu.memory_space<vmem>>, vector<8x128xf32>
    %18 = vector.shape_cast %16 : vector<16x128xf32> to vector<2x8x128xf32>
    %cst_10 = arith.constant dense<0.000000e+00> : vector<8x128xf32>
    %19 = vector.multi_reduction <add>, %18, %cst_10 [0] : vector<2x8x128xf32> to vector<8x128xf32>
    %20 = arith.addf %17, %19 : vector<8x128xf32>
    %c0_11 = arith.constant 0 : index
    %c0_12 = arith.constant 0 : index
    %21 = vector.load %arg4[%c0_11, %c0_12] : memref<8x128xf32, #tpu.memory_space<vmem>>, vector<8x128xf32>
    tpu.vector_store %arg4[%c0_11, %c0_12], %20 {strides = array<i32>} : memref<8x128xf32, #tpu.memory_space<vmem>>, vector<8x128xf32>,
    return
  }
  func.func @transform_0(%arg0: i32, %arg1: i32) -> (i32, i32) {
    %c1_i32 = arith.constant 1 : i32
    %0 = arith.muli %arg0, %c1_i32 : i32
    %1 = arith.addi %0, %arg1 : i32
    %c0_i32 = arith.constant 0 : i32
    %c0_i32_0 = arith.constant 0 : i32
    return %1, %c0_i32 : i32, i32
  }
  func.func @transform_1(%arg0: i32, %arg1: i32) -> (i32, i32) {
    %c1_i32 = arith.constant 1 : i32
    %0 = arith.muli %arg0, %c1_i32 : i32
    %1 = arith.addi %0, %arg1 : i32
    %c0_i32 = arith.constant 0 : i32
    %c0_i32_0 = arith.constant 0 : i32
    return %1, %c0_i32 : i32, i32
  }
  func.func @transform_2(%arg0: i32, %arg1: i32) -> (i32, i32) {
    %c0_i32 = arith.constant 0 : i32
    %c0_i32_0 = arith.constant 0 : i32
    return %arg0, %c0_i32 : i32, i32
  }
}

</mosaic_0001>

<llo_original>
// kernel: tpu_custom_call.1
$region0: #{tpu_custom_call.1}
  #allocation0 [shape = 'u32[]', space=smem, size = 0x4, offset = 0x4, fixed_abs, tag = 'smem constant byte address 0x4 - core index']
  #allocation1 [shape = 'u32[72,128]{1,0:T(1,128)}', space=vmem, size = 0x9000, scoped, tag = 'internal scratch']
  %s0 = inlined_call_operand.hbm [shape: f32[16,128], index: 0, kind: input, shape index: {}]
  %s1 = inlined_call_operand.hbm [shape: f32[16,128], index: 1, kind: input, shape index: {}]
  %s2 = inlined_call_operand.hbm [shape: f32[8,128], index: 2, kind: output, shape index: {}]
  %s3 = sld [smem:[#allocation0]]
  $region30: #{tpu_custom_call.1} parent=0
    _
  %s5 = ssub.s32 1, %s3
  %s6 = scalar_select 0, %s5, %s3
  $region1: #{tpu_custom_call.1} parent=0
    #allocation2 [shape = 'u8[8192]{0}', space=vmem, size = 0x2000, scoped, tag = 'input window, operand 0, single buffered']
    #allocation3 [shape = 's32[1]{0}', space=sflag, size = 0x4, scoped, tag = 'scoped memory for tpu_custom_call.1']
    #allocation4 [shape = 's32[1]{0}', space=sflag, size = 0x4, scoped, tag = 'scoped memory for tpu_custom_call.1']
    #allocation5 [shape = 'u8[8192]{0}', space=vmem, size = 0x2000, scoped, tag = 'input window, operand 1, single buffered']
    #allocation6 [shape = 's32[1]{0}', space=sflag, size = 0x4, scoped, tag = 'scoped memory for tpu_custom_call.1']
    #allocation7 [shape = 'u8[4096]{0}', space=vmem, size = 0x1000, scoped, tag = 'output window, operand 0, single buffered']
    %7 = vsyncpa [#allocation3], 0
    %8 = vsyncpa [#allocation6], 0
    %9 = vsyncpa [#allocation4], 0
    // Predicated region
    $region2: #{tpu_custom_call.1} parent=1 // pred_check
      _
    $region3: #{tpu_custom_call.1} parent=1 // pred_check_branch
      %11 = sbr.rel (0) target = $region5
    $region4: #{tpu_custom_call.1} parent=1 // pred_region
      %s12 = sadd.s32 0, 0
      %s13 = smul.u32 2, %s12
      %15 = vsyncadd [#allocation3], 0
      %s16 = smul.addr %s13, 8
      %s17 = scalar_lea.hbm %s0, %s16
      %s18 = sshll.u32 %s17, 4
      %s19 = int_to_ptr.hbm [resolvable:$true] %s18
      %s20 = sshll.u32 [#allocation2], 4
      %s21 = int_to_ptr.vmem [resolvable:$true] %s20
      %26 = dma.hbm_to_vmem [thread:$0]  %s19, 256, %s21, [#allocation3], 128, 128, 8
    $region5: #{tpu_custom_call.1} parent=1 // pred_fallthru
      _
    // Predicated region
    $region6: #{tpu_custom_call.1} parent=1 // pred_check
      _
    $region7: #{tpu_custom_call.1} parent=1 // pred_check_branch
      %28 = sbr.rel (0) target = $region9
    $region8: #{tpu_custom_call.1} parent=1 // pred_region
      %s29 = sadd.s32 0, 0
      %s30 = smul.u32 2, %s29
      %32 = vsyncadd [#allocation6], 0
      %s33 = smul.addr %s30, 8
      %s34 = scalar_lea.hbm %s1, %s33
      %s35 = sshll.u32 %s34, 4
      %s36 = int_to_ptr.hbm [resolvable:$true] %s35
      %s37 = sshll.u32 [#allocation5], 4
      %s38 = int_to_ptr.vmem [resolvable:$true] %s37
      %43 = dma.hbm_to_vmem [thread:$0]  %s36, 256, %s38, [#allocation6], 128, 128, 8
    $region9: #{tpu_custom_call.1} parent=1 // pred_fallthru
      _
    // Predicated region
    $region10: #{tpu_custom_call.1} parent=1 // pred_check
      _
    $region11: #{tpu_custom_call.1} parent=1 // pred_check_branch
      %45 = sbr.rel (0) target = $region13
    $region12: #{tpu_custom_call.1} parent=1 // pred_region
      %47 = dma.done [#allocation3], 256
    $region13: #{tpu_custom_call.1} parent=1 // pred_fallthru
      _
    // Predicated region
    $region14: #{tpu_custom_call.1} parent=1 // pred_check
      _
    $region15: #{tpu_custom_call.1} parent=1 // pred_check_branch
      %49 = sbr.rel (0) target = $region17
    $region16: #{tpu_custom_call.1} parent=1 // pred_region
      %51 = dma.done [#allocation6], 256
    $region17: #{tpu_custom_call.1} parent=1 // pred_fallthru
      _
    %s52 = sadd.s32 0, 0
    %s53 = smul.u32 2, %s52
    %s54 = sadd.s32 0, 0
    %s55 = smul.u32 2, %s54
    %p56 = scmp.eq.s32.totalorder 0, 0
    // Predicated region
    $region18: #{tpu_custom_call.1} parent=1 // pred_check
      %p57 = pneg %p56
    $region19: #{tpu_custom_call.1} parent=1 // pred_check_branch
      %59 = sbr.rel (%p57) target = $region21
    $region20: #{tpu_custom_call.1} parent=1 // pred_region
      %60 = vst [vmem:[#allocation7] sm:$0xff] 0.0
    $region21: #{tpu_custom_call.1} parent=1 // pred_fallthru
      _
    %v61 = vld [vmem:[#allocation2] sm:$0xff]
    %v62 = vld [vmem:[#allocation2 + $0x8] sm:$0xff]
    %v63 = vld [vmem:[#allocation5] sm:$0xff]
    %v64 = vld [vmem:[#allocation5 + $0x8] sm:$0xff]
    %vm65 = vcmp.ne.f32.partialorder %v63, 0.0
    %vm66 = vcmp.ne.f32.partialorder %v64, 0.0
    %v67 = vsub.f32 1.0, %v61
    %v68 = vsub.f32 1.0, %v62
    %v69 = vsel %vm65, %v61, %v67
    %v70 = vsel %vm66, %v62, %v68
    %v71 = vlog2.pop %v69
    %v72 = vmul.f32 %v71, 0.6931472
    %v73 = vlog2.pop %v70
    %v74 = vmul.f32 %v73, 0.6931472
    %v75 = vmax.f32 %v72, -100.0
    %v76 = vmax.f32 %v74, -100.0
    %v77 = vsel %vm65, 2.0, 1.0
    %v78 = vsel %vm66, 2.0, 1.0
    %v79 = vmul.f32 %v77, %v75
    %v80 = vmul.f32 %v78, %v76
    %v81 = vld [vmem:[#allocation7] sm:$0xff]
    %v82 = vadd.f32 %v79, %v80
    %v83 = vadd.f32 %v81, %v82
    %84 = vst [vmem:[#allocation7] sm:$0xff] %v83
    // Predicated region
    $region22: #{tpu_custom_call.1} parent=1 // pred_check
      _
    $region23: #{tpu_custom_call.1} parent=1 // pred_check_branch
      %86 = sbr.rel (0) target = $region25
    $region24: #{tpu_custom_call.1} parent=1 // pred_region
      %88 = vsyncadd [#allocation4], 0
      %s90 = sshll.u32 [#allocation7], 4
      %s91 = int_to_ptr.vmem [resolvable:$true] %s90
      %s92 = sshll.u32 %s2, 4
      %s93 = int_to_ptr.hbm [resolvable:$true] %s92
      %95 = dma.vmem_to_hbm [thread:$0]  %s91, 128, %s93, [#allocation4]
    $region25: #{tpu_custom_call.1} parent=1 // pred_fallthru
      _
    // Predicated region
    $region26: #{tpu_custom_call.1} parent=1 // pred_check
      _
    $region27: #{tpu_custom_call.1} parent=1 // pred_check_branch
      %97 = sbr.rel (0) target = $region29
    $region28: #{tpu_custom_call.1} parent=1 // pred_region
      %99 = dma.done [#allocation4], 128
    $region29: #{tpu_custom_call.1} parent=1 // pred_fallthru
      _
    %100 = vsyncpa [#allocation3], 1
    %101 = vsyncpa [#allocation6], 1
    %102 = vsyncpa [#allocation4], 1

</llo_original>
